<compile_context>
chip_gen: v5e
topology: v5e:2x2
jax: 0.10.0
libtpu: 0.0.40
codegen_flags: <defaults>
</compile_context>

<pallas_src>
import functools
import math

import jax
import jax.numpy as jnp
from jax.experimental import pallas as pl
from jax.experimental.pallas import tpu as pltpu


def _round_up(x, m):
    return ((x + m - 1) // m) * m


# ----------------------------------------------------------------------------- #
# Pallas kernel (NB batch elements per grid step, packed along lanes)
# ----------------------------------------------------------------------------- #
def make_skconv_kernel(M, Coutp, NB, HWp, hw_true):
    inv_hw = 1.0 / float(hw_true)

    def kernel(p_ref, wp_ref, acomb_ref, batt_ref, out_ref):
        # (1) One lane-wide im2col operand (Kp, NB*HWp): batch packed on lanes
        #     so the main matmul N is NB*HWp (fills the 256-wide MXU on
        #     v6e/v7x and amortizes per-step DMA/overhead).
        if NB == 1:
            xmat = p_ref[0]
        else:
            xmat = jnp.concatenate([p_ref[b] for b in range(NB)], axis=-1)

        # (2) All branch convolutions + conv biases as ONE packed matmul
        #     (bf16 operands, f32 accumulation).  The bias pairs with the
        #     "ones" contraction row of the patch slab (true-HW columns only),
        #     so padded spatial columns of ft stay exactly zero.
        ft = jnp.dot(wp_ref[...], xmat, preferred_element_type=jnp.float32)

        for b in range(NB):                        # static unroll, NB is small
            ft_b = ft[:, b * HWp:(b + 1) * HWp]    # lane slice at 128-multiples

            # (3) Reduce first (XLU lane-sum -> per-branch GAP), then a tiny
            #     f32 matvec for the folded fc + fcs attention heads.
            s_b = jnp.sum(ft_b, axis=1, keepdims=True) * inv_hw
            logits = jnp.dot(acomb_ref[...], s_b,
                             preferred_element_type=jnp.float32) + batt_ref[...]

            # (4) Softmax over the branch axis (M sublane groups of Coutp rows,
            #     zero-cost views since Coutp % 8 == 0).  Exact reciprocal:
            #     logits are only (Coutp, 1) so the divide is negligible.
            ls = [logits[m * Coutp:(m + 1) * Coutp, :] for m in range(M)]
            mx = ls[0]
            for l in ls[1:]:
                mx = jnp.maximum(mx, l)
            es = [jnp.exp(l - mx) for l in ls]
            den = es[0]
            for e in es[1:]:
                den = den + e
            inv = 1.0 / den

            # (5) Attention-weighted branch sum, emitted directly in NCHW
            #     layout (channels on sublanes, H*W on lanes -> lane-dense,
            #     unmasked stores).
            out = (es[0] * inv) * ft_b[0:Coutp, :]
            for m in range(1, M):
                out = out + (es[m] * inv) * ft_b[m * Coutp:(m + 1) * Coutp, :]
            out_ref[b] = out

    return kernel


# ----------------------------------------------------------------------------- #
# One-time (model-load) parameter packing — hoisted out of the forward path
# ----------------------------------------------------------------------------- #
def pack_skconv_params(conv_ws, conv_bs, wfc, fcs_w, fcs_b, ks):
    """Pack SKConv parameters once.  Returns (params, meta): params are device
    arrays consumed by the kernel; meta are static Python ints."""
    M = len(ks)
    assert all(k % 2 == 1 for k in ks), "odd kernel sizes, stride=1 (SAME) only"
    Cout, Cin, _, _ = conv_ws[0].shape
    kmax = max(ks)
    pad = kmax // 2
    K = Cin * kmax * kmax
    Kp = _round_up(K + 1, 128)          # +1 spare contraction row for the bias
    Coutp = _round_up(Cout, 8)          # sublane-group padded channel count
    MC = M * Coutp
    f32 = jnp.float32

    # Packed branch conv weights: rows = (branch, padded channel).
    wp = jnp.zeros((MC, Cin, kmax, kmax), f32)
    for m, (k, w) in enumerate(zip(ks, conv_ws)):
        off = pad - k // 2              # center the k-tap window inside kmax
        wp = wp.at[m * Coutp:m * Coutp + Cout, :, off:off + k, off:off + k].set(
            w.astype(f32))
    wp = wp.reshape(MC, K)
    # Conv bias folded into the contraction: column K pairs with the "ones" row
    # of the patch slab, so the bias-add rides in MXU slack for free.
    bias_col = jnp.zeros((MC, 1), f32)
    for m, b in enumerate(conv_bs):
        bias_col = bias_col.at[m * Coutp:m * Coutp + Cout, 0].set(b.astype(f32))
    wp = jnp.concatenate([wp, bias_col], axis=1)
    wp = jnp.pad(wp, ((0, 0), (0, Kp - (K + 1)))).astype(jnp.bfloat16)

    # Fold fc (1x1 conv, bias-free, no nonlinearity) into the fcs heads:
    #   logits_m = fcs_w[m] @ (wfc @ S) + fcs_b[m] == (fcs_w[m] @ wfc) @ S + fcs_b[m]
    # S (GAP of U = sum_m feats_m) arrives as per-branch GAPs stacked on the
    # sublane axis, hence the horizontal tiling by M.
    acomb = jnp.zeros((MC, Coutp), f32)
    for m in range(M):
        A = fcs_w[m].astype(f32) @ wfc.astype(f32)          # (Cout, Cout)
        acomb = acomb.at[m * Coutp:m * Coutp + Cout, :Cout].set(A)
    acomb = jnp.tile(acomb, (1, M))                         # (MC, MC)

    batt = jnp.zeros((MC, 1), f32)
    for m, b in enumerate(fcs_b):
        batt = batt.at[m * Coutp:m * Coutp + Cout, 0].set(b.astype(f32))

    params = dict(wp=wp, acomb=acomb, batt=batt)
    meta = dict(M=M, Cin=Cin, Cout=Cout, Coutp=Coutp, kmax=kmax, K=K, Kp=Kp)
    return params, meta


# ----------------------------------------------------------------------------- #
# Forward: bf16 im2col + pallas_call
# ----------------------------------------------------------------------------- #
def skconv_pallas(x_nchw, params, *, meta, nb_per_step=None):
    """SKConv forward.  x_nchw: (B, Cin, H, W) -> (B, Cout, H, W)."""
    B, Cin, H, W = x_nchw.shape
    M, Cout, Coutp = meta["M"], meta["Cout"], meta["Coutp"]
    kmax, K, Kp = meta["kmax"], meta["K"], meta["Kp"]
    assert Cin == meta["Cin"]
    pad = kmax // 2
    HW = H * W
    HWp = _round_up(HW, 128)
    MC = M * Coutp

    # Batch elements per grid step: bigger per-step patch DMA and wider matmul
    # N, but keep >= 2 grid steps when B >= 2 so both v7x TensorCores get work.
    if nb_per_step is None:
        per_batch_bytes = Kp * HWp * 2           # bf16 patch slab per image
        nb = max(1, min(B, (512 * 1024) // max(per_batch_bytes, 1)))
        if B >= 2:
            nb = max(1, min(nb, B // 2))
        while B % nb:
            nb -= 1
    else:
        nb = nb_per_step
    assert B % nb == 0
    num_steps = B // nb

    # --- im2col in the wrapper, directly in bf16 (the matmul operand dtype) -- #
    # patches[b, cin*kmax*kmax + kh*kmax + kw, h*W + w] = x_pad[b, cin, h+kh, w+kw]
    x = x_nchw.astype(jnp.bfloat16)
    xp = jnp.pad(x, ((0, 0), (0, 0), (pad, pad), (pad, pad)))
    taps = [xp[:, :, kh:kh + H, kw:kw + W]
            for kh in range(kmax) for kw in range(kmax)]
    patches = jnp.stack(taps, axis=2).reshape(B, K, HW)
    # Spare contraction row (index K): 1.0 on the true HW columns only -> the
    # folded conv bias is added by the matmul while padded spatial columns stay
    # exactly zero (keeps the GAP lane-sum exact).
    ones_row = jnp.ones((B, 1, HW), jnp.bfloat16)
    patches = jnp.concatenate([patches, ones_row], axis=1)
    patches = jnp.pad(patches, ((0, 0), (0, Kp - (K + 1)), (0, HWp - HW)))

    kernel = make_skconv_kernel(M, Coutp, nb, HWp, HW)
    out = pl.pallas_call(
        kernel,
        # Output kept f32 for tight parity with the reference; switch to bf16
        # here to halve writeback traffic (v5e store-slot bound epilogues).
        out_shape=jax.ShapeDtypeStruct((B, Coutp, HWp), jnp.float32),
        grid=(num_steps,),
        in_specs=[
            pl.BlockSpec((nb, Kp, HWp), lambda g: (g, 0, 0)),   # patches
            pl.BlockSpec((MC, Kp), lambda g: (0, 0)),           # packed conv W (+bias col)
            pl.BlockSpec((MC, MC), lambda g: (0, 0)),           # folded attention matrix
            pl.BlockSpec((MC, 1), lambda g: (0, 0)),            # attention bias
        ],
        out_specs=pl.BlockSpec((nb, Coutp, HWp), lambda g: (g, 0, 0)),
        compiler_params=pltpu.CompilerParams(
            dimension_semantics=("parallel",),   # v7x: two TCs split the steps
            vmem_limit_bytes=32 * 1024 * 1024),
    )(patches, params["wp"], params["acomb"], params["batt"])

    # Output is already NCHW; drop channel/lane padding and restore (H, W).
    # TODO(synk): for large H*W add a spatial grid axis (GAP accumulated in a
    # scratch across it) and budget the double-buffered patch tile per
    # generation (v5e/v6e: 128 MiB VMEM, v7x: 64 MiB -> keep 2*nb*Kp*HWtile*2B
    # well under a raised vmem_limit_bytes).
    return out[:, :Cout, :HW].reshape(B, Cout, H, W)


# ----------------------------------------------------------------------------- #
# Pure-JAX f32 reference (for correctness check)
# ----------------------------------------------------------------------------- #
def skconv_ref(x_nchw, conv_ws, conv_bs, wfc, fcs_w, fcs_b, ks):
    M = len(ks)
    feats = []
    for w, b in zip(conv_ws, conv_bs):
        y = jax.lax.conv_general_dilated(
            x_nchw, w, window_strides=(1, 1), padding="SAME",
            dimension_numbers=("NCHW", "OIHW", "NCHW"))
        feats.append(y + b[None, :, None, None])
    feats = jnp.stack(feats, axis=1)                       # (B, M, C, H, W)
    U = feats.sum(axis=1)
    S = U.mean(axis=(2, 3))                                # (B, C)
    Z = S @ wfc.T                                          # (B, d)
    logits = jnp.stack([Z @ fcs_w[m].T + fcs_b[m] for m in range(M)], axis=1)
    att = jax.nn.softmax(logits, axis=1)                   # (B, M, C)
    return (feats * att[:, :, :, None, None]).sum(axis=1)


# ----------------------------------------------------------------------------- #
# Main
# ----------------------------------------------------------------------------- #
if __name__ == "__main__":
    # Module config (matches SKConv __init__ semantics).  B=4 so the default
    # tiling packs 2 images per grid step (exercises the wide-N path) while
    # still leaving 2 grid steps for v7x's two TensorCores.
    B, Cin, H, W = 4, 4, 16, 16
    Cout = 32
    ks = [3, 5]                       # kernel_size list -> M = 2 branches
    r, L = 16, 32
    d = max(int(Cout / r), L)         # = 32
    M = len(ks)

    key = jax.random.PRNGKey(0)
    keys = jax.random.split(key, 2 * M + 1 + 2 * M + 1)
    ki = iter(keys)

    # Branch conv params: weight (Cout, Cin, k, k), bias (Cout,), uniform(-stdv, stdv)
    conv_ws, conv_bs = [], []
    for k in ks:
        n = Cin * k * k
        stdv = 1.0 / math.sqrt(n)
        conv_ws.append(jax.random.uniform(next(ki), (Cout, Cin, k, k),
                                          jnp.float32, -stdv, stdv))
        conv_bs.append(jax.random.uniform(next(ki), (Cout,), jnp.float32, -stdv, stdv))

    # fc: nn.Conv2d(Cout, d, 1, bias=False) -> weight (d, Cout)
    stdv_fc = 1.0 / math.sqrt(Cout)
    wfc = jax.random.uniform(next(ki), (d, Cout), jnp.float32, -stdv_fc, stdv_fc)

    # fcs: M x nn.Linear(d, Cout)
    fcs_w, fcs_b = [], []
    stdv_l = 1.0 / math.sqrt(d)
    for _ in range(M):
        fcs_w.append(jax.random.uniform(next(ki), (Cout, d), jnp.float32, -stdv_l, stdv_l))
        fcs_b.append(jax.random.uniform(next(ki), (Cout,), jnp.float32, -stdv_l, stdv_l))

    x = jax.random.normal(next(ki), (B, Cin, H, W), jnp.float32)

    # One-time parameter packing (model-load time), then a jitted forward that
    # only does the bf16 unfold + pallas_call.
    params, meta = pack_skconv_params(conv_ws, conv_bs, wfc, fcs_w, fcs_b, ks)
    run = jax.jit(functools.partial(skconv_pallas, meta=meta))
    out = jax.block_until_ready(run(x, params))

    ref = skconv_ref(x, conv_ws, conv_bs, wfc, fcs_w, fcs_b, ks)
    assert out.shape == (B, Cout, H, W), out.shape
    # Conv operands (and the folded bias) are bf16 with f32 accumulation ->
    # compare against the f32 reference with a bf16-sized tolerance.
    err = float(jnp.max(jnp.abs(out - ref)))
    assert jnp.allclose(out, ref, rtol=1e-2, atol=1e-2), err

    print("KERNEL_OK")
</pallas_src>

<mosaic_0001>
module attributes {stable_mosaic.version = 11 : i64} {
  func.func @kernel(%arg0: i32, %arg1: memref<2x128x256xbf16, #tpu.memory_space<vmem>>, %arg2: memref<64x128xbf16, #tpu.memory_space<vmem>>, %arg3: memref<64x64xf32, #tpu.memory_space<vmem>>, %arg4: memref<64x1xf32, #tpu.memory_space<vmem>>, %arg5: memref<2x32x256xf32, #tpu.memory_space<vmem>>) attributes {dimension_semantics = [#tpu.dimension_semantics<parallel>], iteration_bounds = array<i64: 2>, scalar_prefetch = 0 : i64, scratch_operands = 0 : i64, tpu.core_type = #tpu.core_type<tc>, window_params = [{transform_indices = @transform_0, window_bounds = array<i64: 2, 128, 256>}, {pipeline_mode = #tpu.pipeline_mode<synchronous>, transform_indices = @transform_1, window_bounds = array<i64: 64, 128>}, {pipeline_mode = #tpu.pipeline_mode<synchronous>, transform_indices = @transform_2, window_bounds = array<i64: 64, 64>}, {pipeline_mode = #tpu.pipeline_mode<synchronous>, transform_indices = @transform_3, window_bounds = array<i64: 64, 1>}, {transform_indices = @transform_4, window_bounds = array<i64: 2, 32, 256>}]} {
    %c0 = arith.constant 0 : index
    %c0_0 = arith.constant 0 : index
    %c0_1 = arith.constant 0 : index
    %0 = vector.load %arg1[%c0, %c0_0, %c0_1] : memref<2x128x256xbf16, #tpu.memory_space<vmem>>, vector<1x128x256xbf16>
    %1 = vector.shape_cast %0 : vector<1x128x256xbf16> to vector<128x256xbf16>
    %c1 = arith.constant 1 : index
    %c0_2 = arith.constant 0 : index
    %c0_3 = arith.constant 0 : index
    %2 = vector.load %arg1[%c1, %c0_2, %c0_3] : memref<2x128x256xbf16, #tpu.memory_space<vmem>>, vector<1x128x256xbf16>
    %3 = vector.shape_cast %2 : vector<1x128x256xbf16> to vector<128x256xbf16>
    %4 = tpu.concatenate %1, %3 in 1 : vector<128x256xbf16>, vector<128x256xbf16> -> vector<128x512xbf16>
    %c0_4 = arith.constant 0 : index
    %c0_5 = arith.constant 0 : index
    %5 = vector.load %arg2[%c0_4, %c0_5] : memref<64x128xbf16, #tpu.memory_space<vmem>>, vector<64x128xbf16>
    %cst = arith.constant dense<0.000000e+00> : vector<64x512xf32>
    %6 = tpu.matmul %5, %4, %cst {dimension_numbers = #tpu.dot_dimension_numbers<[1], [0], [0], [1], [0, 0, 1, 1], [], []>} : vector<64x128xbf16>, vector<128x512xbf16>, vector<64x512xf32> -> vector<64x512xf32>
    %7 = vector.extract_strided_slice %6 {offsets = [0, 0], sizes = [64, 256], strides = [1, 1]} : vector<64x512xf32> to vector<64x256xf32>
    %cst_6 = arith.constant dense<0.000000e+00> : vector<64xf32>
    %8 = vector.multi_reduction <add>, %7, %cst_6 [1] : vector<64x256xf32> to vector<64xf32>
    %9 = vector.shape_cast %8 : vector<64xf32> to vector<64x1xf32>
    %cst_7 = arith.constant 3.906250e-03 : f32
    %10 = vector.broadcast %cst_7 : f32 to vector<64x1xf32>
    %11 = arith.mulf %9, %10 : vector<64x1xf32>
    %c0_8 = arith.constant 0 : index
    %c0_9 = arith.constant 0 : index
    %12 = vector.load %arg3[%c0_8, %c0_9] : memref<64x64xf32, #tpu.memory_space<vmem>>, vector<64x64xf32>
    %cst_10 = arith.constant dense<0.000000e+00> : vector<64x1xf32>
    %13 = tpu.matmul %12, %11, %cst_10 {dimension_numbers = #tpu.dot_dimension_numbers<[1], [0], [0], [1], [0, 0, 1, 1], [], []>} : vector<64x64xf32>, vector<64x1xf32>, vector<64x1xf32> -> vector<64x1xf32>
    %c0_11 = arith.constant 0 : index
    %c0_12 = arith.constant 0 : index
    %14 = vector.load %arg4[%c0_11, %c0_12] : memref<64x1xf32, #tpu.memory_space<vmem>>, vector<64x1xf32>
    %15 = arith.addf %13, %14 : vector<64x1xf32>
    %16 = vector.extract_strided_slice %15 {offsets = [0, 0], sizes = [32, 1], strides = [1, 1]} : vector<64x1xf32> to vector<32x1xf32>
    %17 = vector.extract_strided_slice %15 {offsets = [32, 0], sizes = [32, 1], strides = [1, 1]} : vector<64x1xf32> to vector<32x1xf32>
    %18 = arith.maximumf %16, %17 : vector<32x1xf32>
    %19 = arith.subf %16, %18 : vector<32x1xf32>
    %20 = math.exp %19 : vector<32x1xf32>
    %21 = arith.subf %17, %18 : vector<32x1xf32>
    %22 = math.exp %21 : vector<32x1xf32>
    %23 = arith.addf %20, %22 : vector<32x1xf32>
    %cst_13 = arith.constant 1.000000e+00 : f32
    %24 = vector.broadcast %cst_13 : f32 to vector<32x1xf32>
    %25 = arith.divf %24, %23 : vector<32x1xf32>
    %26 = arith.mulf %20, %25 : vector<32x1xf32>
    %27 = vector.extract_strided_slice %7 {offsets = [0, 0], sizes = [32, 256], strides = [1, 1]} : vector<64x256xf32> to vector<32x256xf32>
    %28 = vector.broadcast %26 : vector<32x1xf32> to vector<32x256xf32>
    %29 = arith.mulf %28, %27 : vector<32x256xf32>
    %30 = arith.mulf %22, %25 : vector<32x1xf32>
    %31 = vector.extract_strided_slice %7 {offsets = [32, 0], sizes = [32, 256], strides = [1, 1]} : vector<64x256xf32> to vector<32x256xf32>
    %32 = vector.broadcast %30 : vector<32x1xf32> to vector<32x256xf32>
    %33 = arith.mulf %32, %31 : vector<32x256xf32>
    %34 = arith.addf %29, %33 : vector<32x256xf32>
    %c0_14 = arith.constant 0 : index
    %c0_15 = arith.constant 0 : index
    %c0_16 = arith.constant 0 : index
    %35 = vector.load %arg5[%c0_14, %c0_15, %c0_16] : memref<2x32x256xf32, #tpu.memory_space<vmem>>, vector<1x32x256xf32>
    %36 = vector.shape_cast %35 : vector<1x32x256xf32> to vector<32x256xf32>
    %37 = vector.shape_cast %34 : vector<32x256xf32> to vector<1x32x256xf32>
    tpu.vector_store %arg5[%c0_14, %c0_15, %c0_16], %37 {strides = array<i32>} : memref<2x32x256xf32, #tpu.memory_space<vmem>>, vector<1x32x256xf32>,
    %38 = vector.extract_strided_slice %6 {offsets = [0, 256], sizes = [64, 256], strides = [1, 1]} : vector<64x512xf32> to vector<64x256xf32>
    %cst_17 = arith.constant dense<0.000000e+00> : vector<64xf32>
    %39 = vector.multi_reduction <add>, %38, %cst_17 [1] : vector<64x256xf32> to vector<64xf32>
    %40 = vector.shape_cast %39 : vector<64xf32> to vector<64x1xf32>
    %cst_18 = arith.constant 3.906250e-03 : f32
    %41 = vector.broadcast %cst_18 : f32 to vector<64x1xf32>
    %42 = arith.mulf %40, %41 : vector<64x1xf32>
    %c0_19 = arith.constant 0 : index
    %c0_20 = arith.constant 0 : index
    %43 = vector.load %arg3[%c0_19, %c0_20] : memref<64x64xf32, #tpu.memory_space<vmem>>, vector<64x64xf32>
    %cst_21 = arith.constant dense<0.000000e+00> : vector<64x1xf32>
    %44 = tpu.matmul %43, %42, %cst_21 {dimension_numbers = #tpu.dot_dimension_numbers<[1], [0], [0], [1], [0, 0, 1, 1], [], []>} : vector<64x64xf32>, vector<64x1xf32>, vector<64x1xf32> -> vector<64x1xf32>
    %c0_22 = arith.constant 0 : index
    %c0_23 = arith.constant 0 : index
    %45 = vector.load %arg4[%c0_22, %c0_23] : memref<64x1xf32, #tpu.memory_space<vmem>>, vector<64x1xf32>
    %46 = arith.addf %44, %45 : vector<64x1xf32>
    %47 = vector.extract_strided_slice %46 {offsets = [0, 0], sizes = [32, 1], strides = [1, 1]} : vector<64x1xf32> to vector<32x1xf32>
    %48 = vector.extract_strided_slice %46 {offsets = [32, 0], sizes = [32, 1], strides = [1, 1]} : vector<64x1xf32> to vector<32x1xf32>
    %49 = arith.maximumf %47, %48 : vector<32x1xf32>
    %50 = arith.subf %47, %49 : vector<32x1xf32>
    %51 = math.exp %50 : vector<32x1xf32>
    %52 = arith.subf %48, %49 : vector<32x1xf32>
    %53 = math.exp %52 : vector<32x1xf32>
    %54 = arith.addf %51, %53 : vector<32x1xf32>
    %cst_24 = arith.constant 1.000000e+00 : f32
    %55 = vector.broadcast %cst_24 : f32 to vector<32x1xf32>
    %56 = arith.divf %55, %54 : vector<32x1xf32>
    %57 = arith.mulf %51, %56 : vector<32x1xf32>
    %58 = vector.extract_strided_slice %38 {offsets = [0, 0], sizes = [32, 256], strides = [1, 1]} : vector<64x256xf32> to vector<32x256xf32>
    %59 = vector.broadcast %57 : vector<32x1xf32> to vector<32x256xf32>
    %60 = arith.mulf %59, %58 : vector<32x256xf32>
    %61 = arith.mulf %53, %56 : vector<32x1xf32>
    %62 = vector.extract_strided_slice %38 {offsets = [32, 0], sizes = [32, 256], strides = [1, 1]} : vector<64x256xf32> to vector<32x256xf32>
    %63 = vector.broadcast %61 : vector<32x1xf32> to vector<32x256xf32>
    %64 = arith.mulf %63, %62 : vector<32x256xf32>
    %65 = arith.addf %60, %64 : vector<32x256xf32>
    %c1_25 = arith.constant 1 : index
    %c0_26 = arith.constant 0 : index
    %c0_27 = arith.constant 0 : index
    %66 = vector.load %arg5[%c1_25, %c0_26, %c0_27] : memref<2x32x256xf32, #tpu.memory_space<vmem>>, vector<1x32x256xf32>
    %67 = vector.shape_cast %66 : vector<1x32x256xf32> to vector<32x256xf32>
    %68 = vector.shape_cast %65 : vector<32x256xf32> to vector<1x32x256xf32>
    tpu.vector_store %arg5[%c1_25, %c0_26, %c0_27], %68 {strides = array<i32>} : memref<2x32x256xf32, #tpu.memory_space<vmem>>, vector<1x32x256xf32>,
    return
  }
  func.func @transform_0(%arg0: i32) -> (i32, i32, i32) {
    %c0_i32 = arith.constant 0 : i32
    %c0_i32_0 = arith.constant 0 : i32
    %c0_i32_1 = arith.constant 0 : i32
    return %arg0, %c0_i32, %c0_i32_0 : i32, i32, i32
  }
  func.func @transform_1(%arg0: i32) -> (i32, i32) {
    %c0_i32 = arith.constant 0 : i32
    %c0_i32_0 = arith.constant 0 : i32
    %c0_i32_1 = arith.constant 0 : i32
    return %c0_i32, %c0_i32_0 : i32, i32
  }
  func.func @transform_2(%arg0: i32) -> (i32, i32) {
    %c0_i32 = arith.constant 0 : i32
    %c0_i32_0 = arith.constant 0 : i32
    %c0_i32_1 = arith.constant 0 : i32
    return %c0_i32, %c0_i32_0 : i32, i32
  }
  func.func @transform_3(%arg0: i32) -> (i32, i32) {
    %c0_i32 = arith.constant 0 : i32
    %c0_i32_0 = arith.constant 0 : i32
    %c0_i32_1 = arith.constant 0 : i32
    return %c0_i32, %c0_i32_0 : i32, i32
  }
  func.func @transform_4(%arg0: i32) -> (i32, i32, i32) {
    %c0_i32 = arith.constant 0 : i32
    %c0_i32_0 = arith.constant 0 : i32
    %c0_i32_1 = arith.constant 0 : i32
    return %arg0, %c0_i32, %c0_i32_0 : i32, i32, i32
  }
}

</mosaic_0001>

<llo_original>
// kernel: skconv_pallas.1
$region0: #{skconv_pallas.1}
  #allocation0 [shape = 'u32[]', space=smem, size = 0x4, offset = 0x4, fixed_abs, tag = 'smem constant byte address 0x4 - core index']
  #allocation1 [shape = 'u32[72,128]{1,0:T(1,128)}', space=vmem, size = 0x9000, scoped, tag = 'internal scratch']
  %s0 = inlined_call_operand.vmem [shape: bf16[4,128,256], index: 0, kind: input, shape index: {}]
  %s1 = inlined_call_operand.vmem [shape: bf16[64,128], index: 1, kind: input, shape index: {}]
  %s2 = inlined_call_operand.vmem [shape: f32[64,64], index: 2, kind: input, shape index: {}]
  %s3 = inlined_call_operand.vmem [shape: f32[64,1], index: 3, kind: input, shape index: {}]
  %s4 = inlined_call_operand.vmem [shape: f32[4,32,256], index: 4, kind: output, shape index: {}]
  %s5 = sld [smem:[#allocation0]]
  $region49: #{skconv_pallas.1} parent=0
    _
  %s7 = ssub.s32 1, %s5
  %s8 = scalar_select 0, %s7, %s5
  loop: start=0, step=1, limit=4
  $region2: #{skconv_pallas.1} parent=0 // loop_pre_header
    _
  $region3: #{skconv_pallas.1} parent=0 // loop_header
    %s10 = sphi 0, %s14
    %p11 = scmp.ge.s32.totalorder %s10, 4
    %s20 = sphi 0, %s22
    %s23 = sphi 0, %s20
    %s24 = sphi 0, %s23
    %s40 = sphi 0, %s24
    %s44 = sphi 0, %s44
    %s46 = sphi 0, %s44
    %s47 = sphi 0, %s46
    %s61 = sphi 0, %s47
    %s65 = sphi 0, %s65
    %s67 = sphi 0, %s65
    %s68 = sphi 0, %s67
    %s82 = sphi 0, %s68
    %s86 = sphi 0, %s86
    %s88 = sphi 0, %s86
    %s89 = sphi 0, %s88
    %s103 = sphi 0, %s89
    %s109 = sphi 0, %s111
    %s112 = sphi 0, %s109
    %s113 = sphi 0, %s112
    %s129 = sphi 0, %s113
  $region4: #{skconv_pallas.1} parent=0 // loop_header_branch
    %13 = sbr.rel (%p11) target = $region8
  $region5: #{skconv_pallas.1} parent=0 // loop_body
    %s15 = ssub.s32 %s10, 1
    %s16 = ssub.s32 %s10, 2
    %s17 = sadd.s32 %s10, 1
    %s18 = ssub.s32 %s10, %s17
    %p19 = scmp.eq.s32.totalorder %s18, 0
    %s21 = sadd.s32 %s20, 1
    %s22 = scalar_select %p19, %s20, %s21
    %p25 = pneg %p19
    %p26 = scmp.eq.s32.totalorder %s10, 1
    %p27 = por %p25, %p26
    %p28 = scmp.ne.s32.totalorder %s20, %s23
    %p29 = scmp.eq.s32.totalorder %s10, 0
    %p30 = por %p28, %p29
    %p31 = scmp.ne.s32.totalorder %s20, %s23
    %p32 = scmp.eq.s32.totalorder %s15, 1
    %p33 = por %p31, %p32
    %p34 = scmp.ne.s32.totalorder %s23, %s24
    %p35 = scmp.eq.s32.totalorder %s15, 0
    %p36 = por %p34, %p35
    %p37 = scmp.ne.s32.totalorder %s23, %s24
    %p38 = scmp.eq.s32.totalorder %s16, 1
    %p39 = por %p37, %p38
    %p41 = scmp.ne.s32.totalorder %s24, %s40
    %p42 = scmp.eq.s32.totalorder %s16, 0
    %p43 = por %p41, %p42
    %s45 = sadd.s32 %s44, 1
    %p48 = scmp.eq.s32.totalorder %s10, 1
    %p49 = scmp.ne.s32.totalorder %s44, %s46
    %p50 = scmp.eq.s32.totalorder %s10, 0
    %p51 = por %p49, %p50
    %p52 = scmp.ne.s32.totalorder %s44, %s46
    %p53 = scmp.eq.s32.totalorder %s15, 1
    %p54 = por %p52, %p53
    %p55 = scmp.ne.s32.totalorder %s46, %s47
    %p56 = scmp.eq.s32.totalorder %s15, 0
    %p57 = por %p55, %p56
    %p58 = scmp.ne.s32.totalorder %s46, %s47
    %p59 = scmp.eq.s32.totalorder %s16, 1
    %p60 = por %p58, %p59
    %p62 = scmp.ne.s32.totalorder %s47, %s61
    %p63 = scmp.eq.s32.totalorder %s16, 0
    %p64 = por %p62, %p63
    %s66 = sadd.s32 %s65, 1
    %p69 = scmp.eq.s32.totalorder %s10, 1
    %p70 = scmp.ne.s32.totalorder %s65, %s67
    %p71 = scmp.eq.s32.totalorder %s10, 0
    %p72 = por %p70, %p71
    %p73 = scmp.ne.s32.totalorder %s65, %s67
    %p74 = scmp.eq.s32.totalorder %s15, 1
    %p75 = por %p73, %p74
    %p76 = scmp.ne.s32.totalorder %s67, %s68
    %p77 = scmp.eq.s32.totalorder %s15, 0
    %p78 = por %p76, %p77
    %p79 = scmp.ne.s32.totalorder %s67, %s68
    %p80 = scmp.eq.s32.totalorder %s16, 1
    %p81 = por %p79, %p80
    %p83 = scmp.ne.s32.totalorder %s68, %s82
    %p84 = scmp.eq.s32.totalorder %s16, 0
    %p85 = por %p83, %p84
    %s87 = sadd.s32 %s86, 1
    %p90 = scmp.eq.s32.totalorder %s10, 1
    %p91 = scmp.ne.s32.totalorder %s86, %s88
    %p92 = scmp.eq.s32.totalorder %s10, 0
    %p93 = por %p91, %p92
    %p94 = scmp.ne.s32.totalorder %s86, %s88
    %p95 = scmp.eq.s32.totalorder %s15, 1
    %p96 = por %p94, %p95
    %p97 = scmp.ne.s32.totalorder %s88, %s89
    %p98 = scmp.eq.s32.totalorder %s15, 0
    %p99 = por %p97, %p98
    %p100 = scmp.ne.s32.totalorder %s88, %s89
    %p101 = scmp.eq.s32.totalorder %s16, 1
    %p102 = por %p100, %p101
    %p104 = scmp.ne.s32.totalorder %s89, %s103
    %p105 = scmp.eq.s32.totalorder %s16, 0
    %p106 = por %p104, %p105
    %s107 = ssub.s32 %s10, %s17
    %p108 = scmp.eq.s32.totalorder %s107, 0
    %s110 = sadd.s32 %s109, 1
    %s111 = scalar_select %p108, %s109, %s110
    %p114 = pneg %p108
    %p115 = scmp.eq.s32.totalorder %s10, 1
    %p116 = por %p114, %p115
    %p117 = scmp.ne.s32.totalorder %s109, %s112
    %p118 = scmp.eq.s32.totalorder %s10, 0
    %p119 = por %p117, %p118
    %p120 = scmp.ne.s32.totalorder %s109, %s112
    %p121 = scmp.eq.s32.totalorder %s15, 1
    %p122 = por %p120, %p121
    %p123 = scmp.ne.s32.totalorder %s112, %s113
    %p124 = scmp.eq.s32.totalorder %s15, 0
    %p125 = por %p123, %p124
    %p126 = scmp.ne.s32.totalorder %s112, %s113
    %p127 = scmp.eq.s32.totalorder %s16, 1
    %p128 = por %p126, %p127
    %p130 = scmp.ne.s32.totalorder %s113, %s129
    %p131 = scmp.eq.s32.totalorder %s16, 0
    %p132 = por %p130, %p131
    %p133 = scmp.le.s32.totalorder 1, %s10
    %p134 = scmp.lt.s32.totalorder %s10, 3
    %p135 = pnand %p133, %p134
    %p136 = pneg %p135
    // Predicated region
    $region9: #{skconv_pallas.1} parent=5 // pred_check
      _
    $region10: #{skconv_pallas.1} parent=5 // pred_check_branch
      %138 = sbr.rel (%p135) target = $region12
    $region11: #{skconv_pallas.1} parent=5 // pred_region
      %s139 = ssub.s32 %s10, 1
      // Predicated region
      $region13: #{skconv_pallas.1} parent=11 // pred_check
        %p140 = pneg %p57
      $region14: #{skconv_pallas.1} parent=11 // pred_check_branch
        %142 = sbr.rel (%p140) target = $region16
      $region15: #{skconv_pallas.1} parent=11 // pred_region
        _
      $region16: #{skconv_pallas.1} parent=11 // pred_fallthru
        _
      // Predicated region
      $region17: #{skconv_pallas.1} parent=11 // pred_check
        %p143 = pneg %p78
      $region18: #{skconv_pallas.1} parent=11 // pred_check_branch
        %145 = sbr.rel (%p143) target = $region20
      $region19: #{skconv_pallas.1} parent=11 // pred_region
        _
      $region20: #{skconv_pallas.1} parent=11 // pred_fallthru
        _
      // Predicated region
      $region21: #{skconv_pallas.1} parent=11 // pred_check
        %p146 = pneg %p99
      $region22: #{skconv_pallas.1} parent=11 // pred_check_branch
        %148 = sbr.rel (%p146) target = $region24
      $region23: #{skconv_pallas.1} parent=11 // pred_region
        _
      $region24: #{skconv_pallas.1} parent=11 // pred_fallthru
        _
    $region12: #{skconv_pallas.1} parent=5 // pred_fallthru
      _
    %p149 = scmp.lt.s32.totalorder %s10, 2
    // Predicated region
    $region25: #{skconv_pallas.1} parent=5 // pred_check
      %p150 = pneg %p149
    $region26: #{skconv_pallas.1} parent=5 // pred_check_branch
      %152 = sbr.rel (%p150) target = $region28
    $region27: #{skconv_pallas.1} parent=5 // pred_region
      // Predicated region
      $region29: #{skconv_pallas.1} parent=27 // pred_check
        %p153 = pneg %p30
      $region30: #{skconv_pallas.1} parent=27 // pred_check_branch
        %155 = sbr.rel (%p153) target = $region32
      $region31: #{skconv_pallas.1} parent=27 // pred_region
        %s156 = smul.u32 2, %s10
        %p157 = scmp.lt.s32.totalorder %s156, 3
        %s158 = scalar_select %p157, %s156, 3
        %s159 = smul.addr %s158, 32
        %s160 = smul.addr %s159, 4
        %s161 = scalar_lea.vmem %s0, %s160
        %s162 = smul.u32 2, %s10
      $region32: #{skconv_pallas.1} parent=27 // pred_fallthru
        _
    $region28: #{skconv_pallas.1} parent=5 // pred_fallthru
      _
    %p163 = scmp.le.s32.totalorder 1, %s10
    %p164 = scmp.lt.s32.totalorder %s10, 3
    %p165 = pnand %p163, %p164
    %p166 = pneg %p165
    // Predicated region
    $region33: #{skconv_pallas.1} parent=5 // pred_check
      _
    $region34: #{skconv_pallas.1} parent=5 // pred_check_branch
      %168 = sbr.rel (%p165) target = $region36
    $region35: #{skconv_pallas.1} parent=5 // pred_region
      %s169 = ssub.s32 %s10, 1
      %s170 = smul.u32 2, %s15
      %p171 = scmp.lt.s32.totalorder %s170, 3
      %s172 = scalar_select %p171, %s170, 3
      %s173 = smul.addr %s172, 32
      %s174 = smul.addr %s173, 4
      %s175 = scalar_lea.vmem %s0, %s174
      %p176 = pneg %p36
      %p177 = pneg %p33
      %p178 = pneg %p57
      %p179 = pneg %p54
      %p180 = pneg %p78
      %p181 = pneg %p75
      %p182 = pneg %p99
      %p183 = pneg %p96
      %p184 = pneg %p125
      %p185 = pneg %p122
      %s186 = smul.u32 2, %s15
      %p187 = scmp.lt.s32.totalorder %s186, 3
      %s188 = scalar_select %p187, %s186, 3
      %s189 = smul.addr %s188, 8
      %s190 = smul.addr %s189, 8
      %s191 = scalar_lea.vmem %s4, %s190
      %s192 = smul.u32 2, %s15
      %p193 = scmp.lt.s32.totalorder %s192, 3
      %s194 = scalar_select %p193, %s192, 3
      %s195 = smul.addr %s194, 32
      %s196 = smul.addr %s195, 4
      %s197 = scalar_lea.vmem %s0, %s196
      %s198 = smul.u32 2, %s15
      %s199 = smul.u32 2, %s15
      %p200 = scmp.lt.s32.totalorder %s199, 3
      %s201 = scalar_select %p200, %s199, 3
      %s202 = smul.addr %s201, 8
      %s203 = smul.addr %s202, 8
      %s204 = scalar_lea.vmem %s4, %s203
      %s205 = smul.u32 2, %s15
      %v206 = vld [vmem:[%s197] sm:$0xff]
      %v207 = vld [vmem:[%s197 + $0x8] sm:$0xff]
      %v208 = vld [vmem:[%s197 + $0x10] sm:$0xff]
      %v209 = vld [vmem:[%s197 + $0x18] sm:$0xff]
      %v210 = vld [vmem:[%s197 + $0x20] sm:$0xff]
      %v211 = vld [vmem:[%s197 + $0x28] sm:$0xff]
      %v212 = vld [vmem:[%s197 + $0x30] sm:$0xff]
      %v213 = vld [vmem:[%s197 + $0x38] sm:$0xff]
      %v214 = vld [vmem:[%s197 + $0x40] sm:$0xff]
      %v215 = vld [vmem:[%s197 + $0x48] sm:$0xff]
      %v216 = vld [vmem:[%s197 + $0x50] sm:$0xff]
      %v217 = vld [vmem:[%s197 + $0x58] sm:$0xff]
      %v218 = vld [vmem:[%s197 + $0x60] sm:$0xff]
      %v219 = vld [vmem:[%s197 + $0x68] sm:$0xff]
      %v220 = vld [vmem:[%s197 + $0x70] sm:$0xff]
      %v221 = vld [vmem:[%s197 + $0x78] sm:$0xff]
      %s222 = scalar_lea.vmem %s197, 128
      %v223 = vld [vmem:[%s222] sm:$0xff]
      %v224 = vld [vmem:[%s222 + $0x8] sm:$0xff]
      %v225 = vld [vmem:[%s222 + $0x10] sm:$0xff]
      %v226 = vld [vmem:[%s222 + $0x18] sm:$0xff]
      %v227 = vld [vmem:[%s222 + $0x20] sm:$0xff]
      %v228 = vld [vmem:[%s222 + $0x28] sm:$0xff]
      %v229 = vld [vmem:[%s222 + $0x30] sm:$0xff]
      %v230 = vld [vmem:[%s222 + $0x38] sm:$0xff]
      %v231 = vld [vmem:[%s222 + $0x40] sm:$0xff]
      %v232 = vld [vmem:[%s222 + $0x48] sm:$0xff]
      %v233 = vld [vmem:[%s222 + $0x50] sm:$0xff]
      %v234 = vld [vmem:[%s222 + $0x58] sm:$0xff]
      %v235 = vld [vmem:[%s222 + $0x60] sm:$0xff]
      %v236 = vld [vmem:[%s222 + $0x68] sm:$0xff]
      %v237 = vld [vmem:[%s222 + $0x70] sm:$0xff]
      %v238 = vld [vmem:[%s222 + $0x78] sm:$0xff]
      %v255 = vunpack.c.l.b16 %v206
      %v256 = vunpack.c.h.b16 %v206
      %v257 = vunpack.c.l.b16 %v207
      %v258 = vunpack.c.h.b16 %v207
      %v259 = vunpack.c.l.b16 %v208
      %v260 = vunpack.c.h.b16 %v208
      %v261 = vunpack.c.l.b16 %v209
      %v262 = vunpack.c.h.b16 %v209
      %v263 = vunpack.c.l.b16 %v210
      %v264 = vunpack.c.h.b16 %v210
      %v265 = vunpack.c.l.b16 %v211
      %v266 = vunpack.c.h.b16 %v211
      %v267 = vunpack.c.l.b16 %v212
      %v268 = vunpack.c.h.b16 %v212
      %v269 = vunpack.c.l.b16 %v213
      %v270 = vunpack.c.h.b16 %v213
      %v271 = vunpack.c.l.b16 %v214
      %v272 = vunpack.c.h.b16 %v214
      %v273 = vunpack.c.l.b16 %v215
      %v274 = vunpack.c.h.b16 %v215
      %v275 = vunpack.c.l.b16 %v216
      %v276 = vunpack.c.h.b16 %v216
      %v277 = vunpack.c.l.b16 %v217
      %v278 = vunpack.c.h.b16 %v217
      %v279 = vunpack.c.l.b16 %v218
      %v280 = vunpack.c.h.b16 %v218
      %v281 = vunpack.c.l.b16 %v219
      %v282 = vunpack.c.h.b16 %v219
      %v283 = vunpack.c.l.b16 %v220
      %v284 = vunpack.c.h.b16 %v220
      %v285 = vunpack.c.l.b16 %v221
      %v286 = vunpack.c.h.b16 %v221
      %v287 = vpack.c.b16 %v257, %v255
      %v288 = vpack.c.b16 %v258, %v256
      %v289 = vpack.c.b16 %v261, %v259
      %v290 = vpack.c.b16 %v262, %v260
      %v291 = vpack.c.b16 %v265, %v263
      %v292 = vpack.c.b16 %v266, %v264
      %v293 = vpack.c.b16 %v269, %v267
      %v294 = vpack.c.b16 %v270, %v268
      %v295 = vpack.c.b16 %v273, %v271
      %v296 = vpack.c.b16 %v274, %v272
      %v297 = vpack.c.b16 %v277, %v275
      %v298 = vpack.c.b16 %v278, %v276
      %v299 = vpack.c.b16 %v281, %v279
      %v300 = vpack.c.b16 %v282, %v280
      %v301 = vpack.c.b16 %v285, %v283
      %v302 = vpack.c.b16 %v286, %v284
      %v335 = vunpack.c.l.b16 %v223
      %v336 = vunpack.c.h.b16 %v223
      %v337 = vunpack.c.l.b16 %v224
      %v338 = vunpack.c.h.b16 %v224
      %v339 = vunpack.c.l.b16 %v225
      %v340 = vunpack.c.h.b16 %v225
      %v341 = vunpack.c.l.b16 %v226
      %v342 = vunpack.c.h.b16 %v226
      %v343 = vunpack.c.l.b16 %v227
      %v344 = vunpack.c.h.b16 %v227
      %v345 = vunpack.c.l.b16 %v228
      %v346 = vunpack.c.h.b16 %v228
      %v347 = vunpack.c.l.b16 %v229
      %v348 = vunpack.c.h.b16 %v229
      %v349 = vunpack.c.l.b16 %v230
      %v350 = vunpack.c.h.b16 %v230
      %v351 = vunpack.c.l.b16 %v231
      %v352 = vunpack.c.h.b16 %v231
      %v353 = vunpack.c.l.b16 %v232
      %v354 = vunpack.c.h.b16 %v232
      %v355 = vunpack.c.l.b16 %v233
      %v356 = vunpack.c.h.b16 %v233
      %v357 = vunpack.c.l.b16 %v234
      %v358 = vunpack.c.h.b16 %v234
      %v359 = vunpack.c.l.b16 %v235
      %v360 = vunpack.c.h.b16 %v235
      %v361 = vunpack.c.l.b16 %v236
      %v362 = vunpack.c.h.b16 %v236
      %v363 = vunpack.c.l.b16 %v237
      %v364 = vunpack.c.h.b16 %v237
      %v365 = vunpack.c.l.b16 %v238
      %v366 = vunpack.c.h.b16 %v238
      %v367 = vpack.c.b16 %v337, %v335
      %v368 = vpack.c.b16 %v338, %v336
      %v369 = vpack.c.b16 %v341, %v339
      %v370 = vpack.c.b16 %v342, %v340
      %v371 = vpack.c.b16 %v345, %v343
      %v372 = vpack.c.b16 %v346, %v344
      %v373 = vpack.c.b16 %v349, %v347
      %v374 = vpack.c.b16 %v350, %v348
      %v375 = vpack.c.b16 %v353, %v351
      %v376 = vpack.c.b16 %v354, %v352
      %v377 = vpack.c.b16 %v357, %v355
      %v378 = vpack.c.b16 %v358, %v356
      %v379 = vpack.c.b16 %v361, %v359
      %v380 = vpack.c.b16 %v362, %v360
      %v381 = vpack.c.b16 %v365, %v363
      %v382 = vpack.c.b16 %v366, %v364
      %v399 = vld [vmem:[%s1] sm:$0xf]
      %v400 = vld [vmem:[%s1 + $0x4] sm:$0xf]
      %v401 = vld [vmem:[%s1 + $0x8] sm:$0xf]
      %v402 = vld [vmem:[%s1 + $0xc] sm:$0xf]
      %v403 = vld [vmem:[%s1 + $0x10] sm:$0xf]
      %v404 = vld [vmem:[%s1 + $0x14] sm:$0xf]
      %v405 = vld [vmem:[%s1 + $0x18] sm:$0xf]
      %v406 = vld [vmem:[%s1 + $0x1c] sm:$0xf]
      %v415 = vunpack.c.l.b16 %v399
      %v416 = vunpack.c.l.b16 %v400
      %v417 = vunpack.c.l.b16 %v401
      %v418 = vunpack.c.l.b16 %v402
      %v419 = vunpack.c.l.b16 %v403
      %v420 = vunpack.c.l.b16 %v404
      %v421 = vunpack.c.l.b16 %v405
      %v422 = vunpack.c.l.b16 %v406
      %v423 = vpack.c.b16 %v416, %v415
      %v424 = vpack.c.b16 %v418, %v417
      %v425 = vpack.c.b16 %v420, %v419
      %v426 = vpack.c.b16 %v422, %v421
      %431 = vmatpush.bf16.msra.mxu0 %v301
      %432 = vmatpush.bf16.msra.mxu0 %v299
      %433 = vmatpush.bf16.msra.mxu0 %v297
      %434 = vmatpush.bf16.msra.mxu0 %v295
      %435 = vmatpush.bf16.msra.mxu0 %v293
      %436 = vmatpush.bf16.msra.mxu0 %v291
      %437 = vmatpush.bf16.msra.mxu0 %v289
      %438 = vmatpush.bf16.msra.mxu0 %v287
      %439 = vmatmul.bf16.gmra.mxu0 %v423
      %v440 = vpop.f32.mrf.mxu0
      %v441 = vadd.f32 0.0, %v440
      %v442 = vpop.f32.mrf.mxu0
      %v443 = vadd.f32 0.0, %v442
      %444 = vmatmul.bf16.gmra.mxu0 %v424
      %v445 = vpop.f32.mrf.mxu0
      %v446 = vadd.f32 0.0, %v445
      %v447 = vpop.f32.mrf.mxu0
      %v448 = vadd.f32 0.0, %v447
      %449 = vmatmul.bf16.gmra.mxu0 %v425
      %v450 = vpop.f32.mrf.mxu0
      %v451 = vadd.f32 0.0, %v450
      %v452 = vpop.f32.mrf.mxu0
      %v453 = vadd.f32 0.0, %v452
      %454 = vmatmul.bf16.gmra.mxu0 %v426
      %v455 = vpop.f32.mrf.mxu0
      %v456 = vadd.f32 0.0, %v455
      %v457 = vpop.f32.mrf.mxu0
      %v458 = vadd.f32 0.0, %v457
      %459 = vdwg.mxu0
      %460 = vmatpush.bf16.msra.mxu0 %v302
      %461 = vmatpush.bf16.msra.mxu0 %v300
      %462 = vmatpush.bf16.msra.mxu0 %v298
      %463 = vmatpush.bf16.msra.mxu0 %v296
      %464 = vmatpush.bf16.msra.mxu0 %v294
      %465 = vmatpush.bf16.msra.mxu0 %v292
      %466 = vmatpush.bf16.msra.mxu0 %v290
      %467 = vmatpush.bf16.msra.mxu0 %v288
      %468 = vmatmul.bf16.gmra.mxu0 %v423
      %v469 = vpop.f32.mrf.mxu0
      %v470 = vadd.f32 0.0, %v469
      %v471 = vpop.f32.mrf.mxu0
      %v472 = vadd.f32 0.0, %v471
      %473 = vmatmul.bf16.gmra.mxu0 %v424
      %v474 = vpop.f32.mrf.mxu0
      %v475 = vadd.f32 0.0, %v474
      %v476 = vpop.f32.mrf.mxu0
      %v477 = vadd.f32 0.0, %v476
      %478 = vmatmul.bf16.gmra.mxu0 %v425
      %v479 = vpop.f32.mrf.mxu0
      %v480 = vadd.f32 0.0, %v479
      %v481 = vpop.f32.mrf.mxu0
      %v482 = vadd.f32 0.0, %v481
      %483 = vmatmul.bf16.gmra.mxu0 %v426
      %v484 = vpop.f32.mrf.mxu0
      %v485 = vadd.f32 0.0, %v484
      %v486 = vpop.f32.mrf.mxu0
      %v487 = vadd.f32 0.0, %v486
      %488 = vdwg.mxu0
      %489 = vmatpush.bf16.msra.mxu0 %v381
      %490 = vmatpush.bf16.msra.mxu0 %v379
      %491 = vmatpush.bf16.msra.mxu0 %v377
      %492 = vmatpush.bf16.msra.mxu0 %v375
      %493 = vmatpush.bf16.msra.mxu0 %v373
      %494 = vmatpush.bf16.msra.mxu0 %v371
      %495 = vmatpush.bf16.msra.mxu0 %v369
      %496 = vmatpush.bf16.msra.mxu0 %v367
      %497 = vmatmul.bf16.gmra.mxu0 %v423
      %v498 = vpop.f32.mrf.mxu0
      %v499 = vadd.f32 0.0, %v498
      %v500 = vpop.f32.mrf.mxu0
      %v501 = vadd.f32 0.0, %v500
      %502 = vmatmul.bf16.gmra.mxu0 %v424
      %v503 = vpop.f32.mrf.mxu0
      %v504 = vadd.f32 0.0, %v503
      %v505 = vpop.f32.mrf.mxu0
      %v506 = vadd.f32 0.0, %v505
      %507 = vmatmul.bf16.gmra.mxu0 %v425
      %v508 = vpop.f32.mrf.mxu0
      %v509 = vadd.f32 0.0, %v508
      %v510 = vpop.f32.mrf.mxu0
      %v511 = vadd.f32 0.0, %v510
      %512 = vmatmul.bf16.gmra.mxu0 %v426
      %v513 = vpop.f32.mrf.mxu0
      %v514 = vadd.f32 0.0, %v513
      %v515 = vpop.f32.mrf.mxu0
      %v516 = vadd.f32 0.0, %v515
      %517 = vdwg.mxu0
      %518 = vmatpush.bf16.msra.mxu0 %v382
      %519 = vmatpush.bf16.msra.mxu0 %v380
      %520 = vmatpush.bf16.msra.mxu0 %v378
      %521 = vmatpush.bf16.msra.mxu0 %v376
      %522 = vmatpush.bf16.msra.mxu0 %v374
      %523 = vmatpush.bf16.msra.mxu0 %v372
      %524 = vmatpush.bf16.msra.mxu0 %v370
      %525 = vmatpush.bf16.msra.mxu0 %v368
      %526 = vmatmul.bf16.gmra.mxu0 %v423
      %v527 = vpop.f32.mrf.mxu0
      %v528 = vadd.f32 0.0, %v527
      %v529 = vpop.f32.mrf.mxu0
      %v530 = vadd.f32 0.0, %v529
      %531 = vmatmul.bf16.gmra.mxu0 %v424
      %v532 = vpop.f32.mrf.mxu0
      %v533 = vadd.f32 0.0, %v532
      %v534 = vpop.f32.mrf.mxu0
      %v535 = vadd.f32 0.0, %v534
      %536 = vmatmul.bf16.gmra.mxu0 %v425
      %v537 = vpop.f32.mrf.mxu0
      %v538 = vadd.f32 0.0, %v537
      %v539 = vpop.f32.mrf.mxu0
      %v540 = vadd.f32 0.0, %v539
      %541 = vmatmul.bf16.gmra.mxu0 %v426
      %v542 = vpop.f32.mrf.mxu0
      %v543 = vadd.f32 0.0, %v542
      %v544 = vpop.f32.mrf.mxu0
      %v545 = vadd.f32 0.0, %v544
      %546 = vdwg.mxu0
      %v547 = vadd.f32 %v441, %v470
      %548 = vadd.xlane.f32.xlu0 %v547
      %v549 = vpop.xlane.xlu0 %548
      %v550 = vadd.f32 %v443, %v472
      %551 = vadd.xlane.f32.xlu0 %v550
      %v552 = vpop.xlane.xlu0 %551
      %v553 = vadd.f32 %v446, %v475
      %554 = vadd.xlane.f32.xlu0 %v553
      %v555 = vpop.xlane.xlu0 %554
      %v556 = vadd.f32 %v448, %v477
      %557 = vadd.xlane.f32.xlu0 %v556
      %v558 = vpop.xlane.xlu0 %557
      %v559 = vadd.f32 %v451, %v480
      %560 = vadd.xlane.f32.xlu0 %v559
      %v561 = vpop.xlane.xlu0 %560
      %v562 = vadd.f32 %v453, %v482
      %563 = vadd.xlane.f32.xlu0 %v562
      %v564 = vpop.xlane.xlu0 %563
      %v565 = vadd.f32 %v456, %v485
      %566 = vadd.xlane.f32.xlu0 %v565
      %v567 = vpop.xlane.xlu0 %566
      %v568 = vadd.f32 %v458, %v487
      %569 = vadd.xlane.f32.xlu0 %v568
      %v570 = vpop.xlane.xlu0 %569
      %v571 = vmul.f32 %v549, 0.00390625
      %v572 = vmul.f32 %v552, 0.00390625
      %v573 = vmul.f32 %v555, 0.00390625
      %v574 = vmul.f32 %v558, 0.00390625
      %v575 = vmul.f32 %v561, 0.00390625
      %v576 = vmul.f32 %v564, 0.00390625
      %v577 = vmul.f32 %v567, 0.00390625
      %v578 = vmul.f32 %v570, 0.00390625
      %v579 = vld [vmem:[%s2] sm:$0xff]
      %v580 = vld [vmem:[%s2 + $0x8] sm:$0xff]
      %v581 = vld [vmem:[%s2 + $0x10] sm:$0xff]
      %v582 = vld [vmem:[%s2 + $0x18] sm:$0xff]
      %v583 = vld [vmem:[%s2 + $0x20] sm:$0xff]
      %v584 = vld [vmem:[%s2 + $0x28] sm:$0xff]
      %v585 = vld [vmem:[%s2 + $0x30] sm:$0xff]
      %v586 = vld [vmem:[%s2 + $0x38] sm:$0xff]
      %v587 = vld [vmem:[%s3] sm:$0xff]
      %v588 = vld [vmem:[%s3 + $0x8] sm:$0xff]
      %v589 = vld [vmem:[%s3 + $0x10] sm:$0xff]
      %v590 = vld [vmem:[%s3 + $0x18] sm:$0xff]
      %v591 = vld [vmem:[%s3 + $0x20] sm:$0xff]
      %v592 = vld [vmem:[%s3 + $0x28] sm:$0xff]
      %v593 = vld [vmem:[%s3 + $0x30] sm:$0xff]
      %v594 = vld [vmem:[%s3 + $0x38] sm:$0xff]
      %vm595 = vcmask 523264
      %v597 = vsel %vm595, %v579, 0
      %v600 = vsel %vm595, %v580, 0
      %v603 = vsel %vm595, %v581, 0
      %v606 = vsel %vm595, %v582, 0
      %v609 = vsel %vm595, %v583, 0
      %v612 = vsel %vm595, %v584, 0
      %v615 = vsel %vm595, %v585, 0
      %v618 = vsel %vm595, %v586, 0
      %620 = vmatpush.msra.mxu0 0.0
      %621 = vmatpush.msra.mxu0 0.0
      %622 = vmatpush.msra.mxu0 0.0
      %623 = vmatpush.msra.mxu0 0.0
      %624 = vmatpush.msra.mxu0 0.0
      %625 = vmatpush.msra.mxu0 0.0
      %626 = vmatpush.msra.mxu0 0.0
      %627 = vmatpush.msra.mxu0 0.0
      %628 = vmatpush.msra.mxu0 %v578
      %629 = vmatpush.msra.mxu0 %v577
      %630 = vmatpush.msra.mxu0 %v576
      %631 = vmatpush.msra.mxu0 %v575
      %632 = vmatpush.msra.mxu0 %v574
      %633 = vmatpush.msra.mxu0 %v573
      %634 = vmatpush.msra.mxu0 %v572
      %635 = vmatpush.msra.mxu0 %v571
      %636 = vmatmul.f32.gmra.mxu0 %v597
      %v637 = vpop.f32.mrf.mxu0
      %v638 = vadd.f32 %v587, %v637
      %639 = vmatmul.f32.gmra.mxu0 %v600
      %v640 = vpop.f32.mrf.mxu0
      %v641 = vadd.f32 %v588, %v640
      %642 = vmatmul.f32.gmra.mxu0 %v603
      %v643 = vpop.f32.mrf.mxu0
      %v644 = vadd.f32 %v589, %v643
      %645 = vmatmul.f32.gmra.mxu0 %v606
      %v646 = vpop.f32.mrf.mxu0
      %v647 = vadd.f32 %v590, %v646
      %648 = vmatmul.f32.gmra.mxu0 %v609
      %v649 = vpop.f32.mrf.mxu0
      %v650 = vadd.f32 %v591, %v649
      %651 = vmatmul.f32.gmra.mxu0 %v612
      %v652 = vpop.f32.mrf.mxu0
      %v653 = vadd.f32 %v592, %v652
      %654 = vmatmul.f32.gmra.mxu0 %v615
      %v655 = vpop.f32.mrf.mxu0
      %v656 = vadd.f32 %v593, %v655
      %657 = vmatmul.f32.gmra.mxu0 %v618
      %v658 = vpop.f32.mrf.mxu0
      %v659 = vadd.f32 %v594, %v658
      %660 = vdwg.mxu0
      %v661 = vmax.f32 %v638, %v650
      %v662 = vmax.f32 %v641, %v653
      %v663 = vmax.f32 %v644, %v656
      %v664 = vmax.f32 %v647, %v659
      %v665 = vsub.f32 %v638, %v661
      %v666 = vsub.f32 %v641, %v662
      %v667 = vsub.f32 %v644, %v663
      %v668 = vsub.f32 %v647, %v664
      %v669 = vmul.f32 %v665, 1.442695
      %v670 = vpow.pop %v669
      %v671 = vmul.f32 %v666, 1.442695
      %v672 = vpow.pop %v671
      %v673 = vmul.f32 %v667, 1.442695
      %v674 = vpow.pop %v673
      %v675 = vmul.f32 %v668, 1.442695
      %v676 = vpow.pop %v675
      %v677 = vsub.f32 %v650, %v661
      %v678 = vsub.f32 %v653, %v662
      %v679 = vsub.f32 %v656, %v663
      %v680 = vsub.f32 %v659, %v664
      %v681 = vmul.f32 %v677, 1.442695
      %v682 = vpow.pop %v681
      %v683 = vmul.f32 %v678, 1.442695
      %v684 = vpow.pop %v683
      %v685 = vmul.f32 %v679, 1.442695
      %v686 = vpow.pop %v685
      %v687 = vmul.f32 %v680, 1.442695
      %v688 = vpow.pop %v687
      %v689 = vadd.f32 %v670, %v682
      %v690 = vadd.f32 %v672, %v684
      %v691 = vadd.f32 %v674, %v686
      %v692 = vadd.f32 %v676, %v688
      %v693 = vrcp.pop %v689
      %v694 = vmul.f32 %v689, %v693
      %v695 = vsub.f32 1.0, %v694
      %v696 = vmul.f32 %v693, %v695
      %v697 = vadd.f32 %v693, %v696
      %vm698 = vweird.f32 %v689
      %vm699 = vweird.f32 %v693
      %vm700 = vmor %vm698, %vm699
      %v701 = vsel %vm700, %v693, %v697
      %v702 = vand.u32 2147483647, %v689
      %vm703 = vcmp.eq.f32.partialorder %v702, 8.507059e+37
      %v704 = vand.u32 %v689, 2147483648
      %v705 = vor.u32 1.1754944e-38, %v704
      %v706 = vsel %vm703, %v705, %v701
      %v707 = vmul.f32 1.0, %v706
      %v708 = vrcp.pop %v690
      %v709 = vmul.f32 %v690, %v708
      %v710 = vsub.f32 1.0, %v709
      %v711 = vmul.f32 %v708, %v710
      %v712 = vadd.f32 %v708, %v711
      %vm713 = vweird.f32 %v690
      %vm714 = vweird.f32 %v708
      %vm715 = vmor %vm713, %vm714
      %v716 = vsel %vm715, %v708, %v712
      %v717 = vand.u32 2147483647, %v690
      %vm718 = vcmp.eq.f32.partialorder %v717, 8.507059e+37
      %v719 = vand.u32 %v690, 2147483648
      %v720 = vor.u32 1.1754944e-38, %v719
      %v721 = vsel %vm718, %v720, %v716
      %v722 = vmul.f32 1.0, %v721
      %v723 = vrcp.pop %v691
      %v724 = vmul.f32 %v691, %v723
      %v725 = vsub.f32 1.0, %v724
      %v726 = vmul.f32 %v723, %v725
      %v727 = vadd.f32 %v723, %v726
      %vm728 = vweird.f32 %v691
      %vm729 = vweird.f32 %v723
      %vm730 = vmor %vm728, %vm729
      %v731 = vsel %vm730, %v723, %v727
      %v732 = vand.u32 2147483647, %v691
      %vm733 = vcmp.eq.f32.partialorder %v732, 8.507059e+37
      %v734 = vand.u32 %v691, 2147483648
      %v735 = vor.u32 1.1754944e-38, %v734
      %v736 = vsel %vm733, %v735, %v731
      %v737 = vmul.f32 1.0, %v736
      %v738 = vrcp.pop %v692
      %v739 = vmul.f32 %v692, %v738
      %v740 = vsub.f32 1.0, %v739
      %v741 = vmul.f32 %v738, %v740
      %v742 = vadd.f32 %v738, %v741
      %vm743 = vweird.f32 %v692
      %vm744 = vweird.f32 %v738
      %vm745 = vmor %vm743, %vm744
      %v746 = vsel %vm745, %v738, %v742
      %v747 = vand.u32 2147483647, %v692
      %vm748 = vcmp.eq.f32.partialorder %v747, 8.507059e+37
      %v749 = vand.u32 %v692, 2147483648
      %v750 = vor.u32 1.1754944e-38, %v749
      %v751 = vsel %vm748, %v750, %v746
      %v752 = vmul.f32 1.0, %v751
      %v753 = vmul.f32 %v670, %v707
      %v754 = vmul.f32 %v672, %v722
      %v755 = vmul.f32 %v674, %v737
      %v756 = vmul.f32 %v676, %v752
      %758 = vset.pattern.permute.xlu0 0
      %759 = vperm.xlu0 %758, %v753
      %v760 = vpop.permute.xlu0 %759
      %763 = vset.pattern.permute.xlu0 0
      %764 = vperm.xlu0 %763, %v754
      %v765 = vpop.permute.xlu0 %764
      %768 = vset.pattern.permute.xlu0 0
      %769 = vperm.xlu0 %768, %v755
      %v770 = vpop.permute.xlu0 %769
      %773 = vset.pattern.permute.xlu0 0
      %774 = vperm.xlu0 %773, %v756
      %v775 = vpop.permute.xlu0 %774
      %v777 = vmul.f32 %v760, %v441
      %v778 = vmul.f32 %v760, %v470
      %v779 = vmul.f32 %v765, %v443
      %v780 = vmul.f32 %v765, %v472
      %v781 = vmul.f32 %v770, %v446
      %v782 = vmul.f32 %v770, %v475
      %v783 = vmul.f32 %v775, %v448
      %v784 = vmul.f32 %v775, %v477
      %v785 = vmul.f32 %v682, %v707
      %v786 = vmul.f32 %v684, %v722
      %v787 = vmul.f32 %v686, %v737
      %v788 = vmul.f32 %v688, %v752
      %790 = vset.pattern.permute.xlu0 0
      %791 = vperm.xlu0 %790, %v785
      %v792 = vpop.permute.xlu0 %791
      %795 = vset.pattern.permute.xlu0 0
      %796 = vperm.xlu0 %795, %v786
      %v797 = vpop.permute.xlu0 %796
      %800 = vset.pattern.permute.xlu0 0
      %801 = vperm.xlu0 %800, %v787
      %v802 = vpop.permute.xlu0 %801
      %805 = vset.pattern.permute.xlu0 0
      %806 = vperm.xlu0 %805, %v788
      %v807 = vpop.permute.xlu0 %806
      %v809 = vmul.f32 %v792, %v451
      %v810 = vmul.f32 %v792, %v480
      %v811 = vmul.f32 %v797, %v453
      %v812 = vmul.f32 %v797, %v482
      %v813 = vmul.f32 %v802, %v456
      %v814 = vmul.f32 %v802, %v485
      %v815 = vmul.f32 %v807, %v458
      %v816 = vmul.f32 %v807, %v487
      %v817 = vadd.f32 %v777, %v809
      %v818 = vadd.f32 %v778, %v810
      %v819 = vadd.f32 %v779, %v811
      %v820 = vadd.f32 %v780, %v812
      %v821 = vadd.f32 %v781, %v813
      %v822 = vadd.f32 %v782, %v814
      %v823 = vadd.f32 %v783, %v815
      %v824 = vadd.f32 %v784, %v816
      %825 = vst [vmem:[%s204] sm:$0xff] %v817
      %826 = vst [vmem:[%s204 + $0x8] sm:$0xff] %v818
      %827 = vst [vmem:[%s204 + $0x10] sm:$0xff] %v819
      %828 = vst [vmem:[%s204 + $0x18] sm:$0xff] %v820
      %829 = vst [vmem:[%s204 + $0x20] sm:$0xff] %v821
      %830 = vst [vmem:[%s204 + $0x28] sm:$0xff] %v822
      %831 = vst [vmem:[%s204 + $0x30] sm:$0xff] %v823
      %832 = vst [vmem:[%s204 + $0x38] sm:$0xff] %v824
      %v833 = vadd.f32 %v499, %v528
      %834 = vadd.xlane.f32.xlu0 %v833
      %v835 = vpop.xlane.xlu0 %834
      %v836 = vadd.f32 %v501, %v530
      %837 = vadd.xlane.f32.xlu0 %v836
      %v838 = vpop.xlane.xlu0 %837
      %v839 = vadd.f32 %v504, %v533
      %840 = vadd.xlane.f32.xlu0 %v839
      %v841 = vpop.xlane.xlu0 %840
      %v842 = vadd.f32 %v506, %v535
      %843 = vadd.xlane.f32.xlu0 %v842
      %v844 = vpop.xlane.xlu0 %843
      %v845 = vadd.f32 %v509, %v538
      %846 = vadd.xlane.f32.xlu0 %v845
      %v847 = vpop.xlane.xlu0 %846
      %v848 = vadd.f32 %v511, %v540
      %849 = vadd.xlane.f32.xlu0 %v848
      %v850 = vpop.xlane.xlu0 %849
      %v851 = vadd.f32 %v514, %v543
      %852 = vadd.xlane.f32.xlu0 %v851
      %v853 = vpop.xlane.xlu0 %852
      %v854 = vadd.f32 %v516, %v545
      %855 = vadd.xlane.f32.xlu0 %v854
      %v856 = vpop.xlane.xlu0 %855
      %v857 = vmul.f32 %v835, 0.00390625
      %v858 = vmul.f32 %v838, 0.00390625
      %v859 = vmul.f32 %v841, 0.00390625
      %v860 = vmul.f32 %v844, 0.00390625
      %v861 = vmul.f32 %v847, 0.00390625
      %v862 = vmul.f32 %v850, 0.00390625
      %v863 = vmul.f32 %v853, 0.00390625
      %v864 = vmul.f32 %v856, 0.00390625
      %v865 = vld [vmem:[%s2] sm:$0xff]
      %v866 = vld [vmem:[%s2 + $0x8] sm:$0xff]
      %v867 = vld [vmem:[%s2 + $0x10] sm:$0xff]
      %v868 = vld [vmem:[%s2 + $0x18] sm:$0xff]
      %v869 = vld [vmem:[%s2 + $0x20] sm:$0xff]
      %v870 = vld [vmem:[%s2 + $0x28] sm:$0xff]
      %v871 = vld [vmem:[%s2 + $0x30] sm:$0xff]
      %v872 = vld [vmem:[%s2 + $0x38] sm:$0xff]
      %v873 = vld [vmem:[%s3] sm:$0xff]
      %v874 = vld [vmem:[%s3 + $0x8] sm:$0xff]
      %v875 = vld [vmem:[%s3 + $0x10] sm:$0xff]
      %v876 = vld [vmem:[%s3 + $0x18] sm:$0xff]
      %v877 = vld [vmem:[%s3 + $0x20] sm:$0xff]
      %v878 = vld [vmem:[%s3 + $0x28] sm:$0xff]
      %v879 = vld [vmem:[%s3 + $0x30] sm:$0xff]
      %v880 = vld [vmem:[%s3 + $0x38] sm:$0xff]
      %v882 = vsel %vm595, %v865, 0
      %v885 = vsel %vm595, %v866, 0
      %v888 = vsel %vm595, %v867, 0
      %v891 = vsel %vm595, %v868, 0
      %v894 = vsel %vm595, %v869, 0
      %v897 = vsel %vm595, %v870, 0
      %v900 = vsel %vm595, %v871, 0
      %v903 = vsel %vm595, %v872, 0
      %905 = vmatpush.msra.mxu0 0.0
      %906 = vmatpush.msra.mxu0 0.0
      %907 = vmatpush.msra.mxu0 0.0
      %908 = vmatpush.msra.mxu0 0.0
      %909 = vmatpush.msra.mxu0 0.0
      %910 = vmatpush.msra.mxu0 0.0
      %911 = vmatpush.msra.mxu0 0.0
      %912 = vmatpush.msra.mxu0 0.0
      %913 = vmatpush.msra.mxu0 %v864
      %914 = vmatpush.msra.mxu0 %v863
      %915 = vmatpush.msra.mxu0 %v862
      %916 = vmatpush.msra.mxu0 %v861
      %917 = vmatpush.msra.mxu0 %v860
      %918 = vmatpush.msra.mxu0 %v859
      %919 = vmatpush.msra.mxu0 %v858
      %920 = vmatpush.msra.mxu0 %v857
      %921 = vmatmul.f32.gmra.mxu0 %v882
      %v922 = vpop.f32.mrf.mxu0
      %v923 = vadd.f32 %v873, %v922
      %924 = vmatmul.f32.gmra.mxu0 %v885
      %v925 = vpop.f32.mrf.mxu0
      %v926 = vadd.f32 %v874, %v925
      %927 = vmatmul.f32.gmra.mxu0 %v888
      %v928 = vpop.f32.mrf.mxu0
      %v929 = vadd.f32 %v875, %v928
      %930 = vmatmul.f32.gmra.mxu0 %v891
      %v931 = vpop.f32.mrf.mxu0
      %v932 = vadd.f32 %v876, %v931
      %933 = vmatmul.f32.gmra.mxu0 %v894
      %v934 = vpop.f32.mrf.mxu0
      %v935 = vadd.f32 %v877, %v934
      %936 = vmatmul.f32.gmra.mxu0 %v897
      %v937 = vpop.f32.mrf.mxu0
      %v938 = vadd.f32 %v878, %v937
      %939 = vmatmul.f32.gmra.mxu0 %v900
      %v940 = vpop.f32.mrf.mxu0
      %v941 = vadd.f32 %v879, %v940
      %942 = vmatmul.f32.gmra.mxu0 %v903
      %v943 = vpop.f32.mrf.mxu0
      %v944 = vadd.f32 %v880, %v943
      %945 = vdwg.mxu0
      %v946 = vmax.f32 %v923, %v935
      %v947 = vmax.f32 %v926, %v938
      %v948 = vmax.f32 %v929, %v941
      %v949 = vmax.f32 %v932, %v944
      %v950 = vsub.f32 %v923, %v946
      %v951 = vsub.f32 %v926, %v947
      %v952 = vsub.f32 %v929, %v948
      %v953 = vsub.f32 %v932, %v949
      %v954 = vmul.f32 %v950, 1.442695
      %v955 = vpow.pop %v954
      %v956 = vmul.f32 %v951, 1.442695
      %v957 = vpow.pop %v956
      %v958 = vmul.f32 %v952, 1.442695
      %v959 = vpow.pop %v958
      %v960 = vmul.f32 %v953, 1.442695
      %v961 = vpow.pop %v960
      %v962 = vsub.f32 %v935, %v946
      %v963 = vsub.f32 %v938, %v947
      %v964 = vsub.f32 %v941, %v948
      %v965 = vsub.f32 %v944, %v949
      %v966 = vmul.f32 %v962, 1.442695
      %v967 = vpow.pop %v966
      %v968 = vmul.f32 %v963, 1.442695
      %v969 = vpow.pop %v968
      %v970 = vmul.f32 %v964, 1.442695
      %v971 = vpow.pop %v970
      %v972 = vmul.f32 %v965, 1.442695
      %v973 = vpow.pop %v972
      %v974 = vadd.f32 %v955, %v967
      %v975 = vadd.f32 %v957, %v969
      %v976 = vadd.f32 %v959, %v971
      %v977 = vadd.f32 %v961, %v973
      %v978 = vrcp.pop %v974
      %v979 = vmul.f32 %v974, %v978
      %v980 = vsub.f32 1.0, %v979
      %v981 = vmul.f32 %v978, %v980
      %v982 = vadd.f32 %v978, %v981
      %vm983 = vweird.f32 %v974
      %vm984 = vweird.f32 %v978
      %vm985 = vmor %vm983, %vm984
      %v986 = vsel %vm985, %v978, %v982
      %v987 = vand.u32 2147483647, %v974
      %vm988 = vcmp.eq.f32.partialorder %v987, 8.507059e+37
      %v989 = vand.u32 %v974, 2147483648
      %v990 = vor.u32 1.1754944e-38, %v989
      %v991 = vsel %vm988, %v990, %v986
      %v992 = vmul.f32 1.0, %v991
      %v993 = vrcp.pop %v975
      %v994 = vmul.f32 %v975, %v993
      %v995 = vsub.f32 1.0, %v994
      %v996 = vmul.f32 %v993, %v995
      %v997 = vadd.f32 %v993, %v996
      %vm998 = vweird.f32 %v975
      %vm999 = vweird.f32 %v993
      %vm1000 = vmor %vm998, %vm999
      %v1001 = vsel %vm1000, %v993, %v997
      %v1002 = vand.u32 2147483647, %v975
      %vm1003 = vcmp.eq.f32.partialorder %v1002, 8.507059e+37
      %v1004 = vand.u32 %v975, 2147483648
      %v1005 = vor.u32 1.1754944e-38, %v1004
      %v1006 = vsel %vm1003, %v1005, %v1001
      %v1007 = vmul.f32 1.0, %v1006
      %v1008 = vrcp.pop %v976
      %v1009 = vmul.f32 %v976, %v1008
      %v1010 = vsub.f32 1.0, %v1009
      %v1011 = vmul.f32 %v1008, %v1010
      %v1012 = vadd.f32 %v1008, %v1011
      %vm1013 = vweird.f32 %v976
      %vm1014 = vweird.f32 %v1008
      %vm1015 = vmor %vm1013, %vm1014
      %v1016 = vsel %vm1015, %v1008, %v1012
      %v1017 = vand.u32 2147483647, %v976
      %vm1018 = vcmp.eq.f32.partialorder %v1017, 8.507059e+37
      %v1019 = vand.u32 %v976, 2147483648
      %v1020 = vor.u32 1.1754944e-38, %v1019
      %v1021 = vsel %vm1018, %v1020, %v1016
      %v1022 = vmul.f32 1.0, %v1021
      %v1023 = vrcp.pop %v977
      %v1024 = vmul.f32 %v977, %v1023
      %v1025 = vsub.f32 1.0, %v1024
      %v1026 = vmul.f32 %v1023, %v1025
      %v1027 = vadd.f32 %v1023, %v1026
      %vm1028 = vweird.f32 %v977
      %vm1029 = vweird.f32 %v1023
      %vm1030 = vmor %vm1028, %vm1029
      %v1031 = vsel %vm1030, %v1023, %v1027
      %v1032 = vand.u32 2147483647, %v977
      %vm1033 = vcmp.eq.f32.partialorder %v1032, 8.507059e+37
      %v1034 = vand.u32 %v977, 2147483648
      %v1035 = vor.u32 1.1754944e-38, %v1034
      %v1036 = vsel %vm1033, %v1035, %v1031
      %v1037 = vmul.f32 1.0, %v1036
      %v1038 = vmul.f32 %v955, %v992
      %v1039 = vmul.f32 %v957, %v1007
      %v1040 = vmul.f32 %v959, %v1022
      %v1041 = vmul.f32 %v961, %v1037
      %1043 = vset.pattern.permute.xlu0 0
      %1044 = vperm.xlu0 %1043, %v1038
      %v1045 = vpop.permute.xlu0 %1044
      %1048 = vset.pattern.permute.xlu0 0
      %1049 = vperm.xlu0 %1048, %v1039
      %v1050 = vpop.permute.xlu0 %1049
      %1053 = vset.pattern.permute.xlu0 0
      %1054 = vperm.xlu0 %1053, %v1040
      %v1055 = vpop.permute.xlu0 %1054
      %1058 = vset.pattern.permute.xlu0 0
      %1059 = vperm.xlu0 %1058, %v1041
      %v1060 = vpop.permute.xlu0 %1059
      %v1062 = vmul.f32 %v1045, %v499
      %v1063 = vmul.f32 %v1045, %v528
      %v1064 = vmul.f32 %v1050, %v501
      %v1065 = vmul.f32 %v1050, %v530
      %v1066 = vmul.f32 %v1055, %v504
      %v1067 = vmul.f32 %v1055, %v533
      %v1068 = vmul.f32 %v1060, %v506
      %v1069 = vmul.f32 %v1060, %v535
      %v1070 = vmul.f32 %v967, %v992
      %v1071 = vmul.f32 %v969, %v1007
      %v1072 = vmul.f32 %v971, %v1022
      %v1073 = vmul.f32 %v973, %v1037
      %1075 = vset.pattern.permute.xlu0 0
      %1076 = vperm.xlu0 %1075, %v1070
      %v1077 = vpop.permute.xlu0 %1076
      %1080 = vset.pattern.permute.xlu0 0
      %1081 = vperm.xlu0 %1080, %v1071
      %v1082 = vpop.permute.xlu0 %1081
      %1085 = vset.pattern.permute.xlu0 0
      %1086 = vperm.xlu0 %1085, %v1072
      %v1087 = vpop.permute.xlu0 %1086
      %1090 = vset.pattern.permute.xlu0 0
      %1091 = vperm.xlu0 %1090, %v1073
      %v1092 = vpop.permute.xlu0 %1091
      %v1094 = vmul.f32 %v1077, %v509
      %v1095 = vmul.f32 %v1077, %v538
      %v1096 = vmul.f32 %v1082, %v511
      %v1097 = vmul.f32 %v1082, %v540
      %v1098 = vmul.f32 %v1087, %v514
      %v1099 = vmul.f32 %v1087, %v543
      %v1100 = vmul.f32 %v1092, %v516
      %v1101 = vmul.f32 %v1092, %v545
      %v1102 = vadd.f32 %v1062, %v1094
      %v1103 = vadd.f32 %v1063, %v1095
      %v1104 = vadd.f32 %v1064, %v1096
      %v1105 = vadd.f32 %v1065, %v1097
      %v1106 = vadd.f32 %v1066, %v1098
      %v1107 = vadd.f32 %v1067, %v1099
      %v1108 = vadd.f32 %v1068, %v1100
      %v1109 = vadd.f32 %v1069, %v1101
      %s1110 = scalar_lea.vmem %s204, 64
      %1111 = vst [vmem:[%s1110] sm:$0xff] %v1102
      %1112 = vst [vmem:[%s1110 + $0x8] sm:$0xff] %v1103
      %1113 = vst [vmem:[%s1110 + $0x10] sm:$0xff] %v1104
      %1114 = vst [vmem:[%s1110 + $0x18] sm:$0xff] %v1105
      %1115 = vst [vmem:[%s1110 + $0x20] sm:$0xff] %v1106
      %1116 = vst [vmem:[%s1110 + $0x28] sm:$0xff] %v1107
      %1117 = vst [vmem:[%s1110 + $0x30] sm:$0xff] %v1108
      %1118 = vst [vmem:[%s1110 + $0x38] sm:$0xff] %v1109
      %s1119 = smul.u32 2, %s15
      %p1120 = scmp.lt.s32.totalorder %s1119, 3
      %s1121 = scalar_select %p1120, %s1119, 3
      %s1122 = smul.addr %s1121, 8
      %s1123 = smul.addr %s1122, 8
      %s1124 = scalar_lea.vmem %s4, %s1123
      // Predicated region
      $region37: #{skconv_pallas.1} parent=35 // pred_check
        %p1125 = pneg %p122
      $region38: #{skconv_pallas.1} parent=35 // pred_check_branch
        %1127 = sbr.rel (%p1125) target = $region40
      $region39: #{skconv_pallas.1} parent=35 // pred_region
        %s1128 = smul.u32 2, %s15
      $region40: #{skconv_pallas.1} parent=35 // pred_fallthru
        _
    $region36: #{skconv_pallas.1} parent=5 // pred_fallthru
      _
    %p1129 = scmp.le.s32.totalorder 2, %s10
    // Predicated region
    $region41: #{skconv_pallas.1} parent=5 // pred_check
      %p1130 = pneg %p1129
    $region42: #{skconv_pallas.1} parent=5 // pred_check_branch
      %1132 = sbr.rel (%p1130) target = $region44
    $region43: #{skconv_pallas.1} parent=5 // pred_region
      %s1133 = ssub.s32 %s10, 2
      // Predicated region
      $region45: #{skconv_pallas.1} parent=43 // pred_check
        %p1134 = pneg %p128
      $region46: #{skconv_pallas.1} parent=43 // pred_check_branch
        %1136 = sbr.rel (%p1134) target = $region48
      $region47: #{skconv_pallas.1} parent=43 // pred_region
        %s1137 = smul.u32 2, %s16
        %p1138 = scmp.lt.s32.totalorder %s1137, 3
        %s1139 = scalar_select %p1138, %s1137, 3
        %s1140 = smul.addr %s1139, 8
        %s1141 = smul.addr %s1140, 8
        %s1142 = scalar_lea.vmem %s4, %s1141
      $region48: #{skconv_pallas.1} parent=43 // pred_fallthru
        _
    $region44: #{skconv_pallas.1} parent=5 // pred_fallthru
      _
  $region6: #{skconv_pallas.1} parent=0 // loop_footer
    %s14 = sadd.s32 1, %s10
  $region7: #{skconv_pallas.1} parent=0 // loop_footer_branch
    %9 = sbr.rel target = $region3
  $region8: #{skconv_pallas.1} parent=0 // loop_exit
    _

</llo_original>
